<compile_context>
chip_gen: v7x
topology: tpu7x:2x2x1
jax: 0.10.0
libtpu: 0.0.40
codegen_flags: <defaults>
</compile_context>

<pallas_src>
import functools

import jax
import jax.numpy as jnp
from jax import lax
from jax.experimental import pallas as pl
from jax.experimental.pallas import tpu as pltpu


def _colbert_kernel(qd_ref, mask_ref, w_ref, score_ref, simmat_ref, *, lq):
    """One grid step processes a block of Bblk batch elements.

    qd_ref:     [Bblk, L, H]  bf16  concat(q_hidden, d_hidden) along seq (L = Lq+Ld)
    mask_ref:   [Bblk, L, 1]  f32   1.0 for query rows, skiplist*doc_mask for doc rows
    w_ref:      [D, H]        bf16  clinear weight in torch layout (no transpose)
    score_ref:  [Bblk, 1]     f32
    simmat_ref: [Bblk, L, D]  f32
    """
    x = qd_ref[...]
    w = w_ref[...]
    mask = mask_ref[...]

    bb, seq_len, hidden = x.shape
    d_out = w.shape[0]

    # Single fused projection for all Bblk*(Lq+Ld) rows; f32 MXU accumulation.
    col = lax.dot_general(
        x.reshape(bb * seq_len, hidden), w,
        dimension_numbers=(((1,), (1,)), ((), ())),
        preferred_element_type=jnp.float32,
    ).reshape(bb, seq_len, d_out)

    # col_d_reps = col_d_reps * mask.unsqueeze(2)   (query rows carry mask == 1)
    col = col * mask

    # F.normalize(p=2, dim=2): x / max(||x||, 1e-12)  ==  x * rsqrt(max(sumsq, 1e-24))
    sumsq = jnp.sum(col * col, axis=-1, keepdims=True)
    rep = col * lax.rsqrt(jnp.maximum(sumsq, jnp.float32(1e-24)))

    # simmat = cat([q_rep, d_rep], dim=1) — one contiguous lane-dense store.
    simmat_ref[...] = rep.astype(simmat_ref.dtype)

    # MaxSim: sim = q_rep @ d_rep^T, max over doc tokens, sum over query tokens.
    q_rep = rep[:, :lq, :]
    d_rep = rep[:, lq:, :]
    sim = lax.dot_general(
        q_rep, d_rep,
        dimension_numbers=(((2,), (2,)), ((0,), (0,))),
        preferred_element_type=jnp.float32,
    )                                                          # [Bblk, Lq, Ld]
    score_ref[...] = jnp.sum(jnp.max(sim, axis=2), axis=1, keepdims=True)


def skiplist_mask(doc_tok, doc_mask):
    """Reproduces the punctuation-skiplist mask from ColBertRanker.forward."""
    t = doc_tok
    cond = (((t >= 999) & (t <= 1013)) |
            ((t >= 1024) & (t <= 1036)) |
            ((t >= 1063) & (t <= 1066)) |
            (t == -1))
    return jnp.where(cond, jnp.float32(0.0), doc_mask.astype(jnp.float32))


def _choose_block_b(B, L, H, D):
    """Pick a batch block size.  Double-buffered per-step tiles are kept under a
    ~24 MiB budget so the same choice is safe on v7x (64 MiB VMEM) as well as
    v5e/v6e (128 MiB)."""
    budget = 24 * 1024 * 1024
    per_b = 2 * (L * H * 2                 # qd tile (bf16), double-buffered
                 + L * max(D, 128) * 4     # simmat tile (f32)
                 + L * 128 * 4             # mask tile (f32, lane-padded)
                 + 128 * 4)                # score tile
    cap = max(1, budget // per_b)
    if B <= cap:
        return B, B                        # whole batch in one block, no padding
    bb = max(8, (min(cap, B) // 8) * 8)    # multiple of 8 so the (bb, 1) score
                                           # block is sublane-aligned / legal
    b_padded = -(-B // bb) * bb
    return bb, b_padded


def colbert_rank(q_hidden, d_hidden, doc_tok, doc_mask, clinear_w):
    """q_hidden: [B,Lq,H], d_hidden: [B,Ld,H], doc_tok/doc_mask: [B,Ld],
    clinear_w: [D,H] (torch Linear layout). Returns (score [B,1], simmat [B,Lq+Ld,D])."""
    B, Lq, H = q_hidden.shape
    _, Ld, _ = d_hidden.shape
    D = clinear_w.shape[0]
    L = Lq + Ld

    # bf16 matmul inputs (f32 accumulation in-kernel) halve input HBM traffic.
    qd = jnp.concatenate([q_hidden, d_hidden], axis=1).astype(jnp.bfloat16)  # [B, L, H]
    w = clinear_w.astype(jnp.bfloat16)                                       # [D, H]

    d_mask = skiplist_mask(doc_tok, doc_mask)                                # [B, Ld]
    full_mask = jnp.concatenate(
        [jnp.ones((B, Lq), jnp.float32), d_mask], axis=1)[..., None]         # [B, L, 1]

    block_b, b_padded = _choose_block_b(B, L, H, D)
    if b_padded != B:
        pad = b_padded - B
        qd = jnp.pad(qd, ((0, pad), (0, 0), (0, 0)))
        full_mask = jnp.pad(full_mask, ((0, pad), (0, 0), (0, 0)))

    tile_bytes = (block_b * L * H * 2 + block_b * L * max(D, 128) * 4
                  + block_b * L * 128 * 4 + block_b * 128 * 4 + D * H * 2)
    vmem_limit = int(min(48 * 1024 * 1024, max(32 * 1024 * 1024, 4 * tile_bytes)))

    kernel = functools.partial(_colbert_kernel, lq=Lq)

    score, simmat = pl.pallas_call(
        kernel,
        out_shape=(jax.ShapeDtypeStruct((b_padded, 1), jnp.float32),
                   jax.ShapeDtypeStruct((b_padded, L, D), jnp.float32)),
        grid_spec=pltpu.PrefetchScalarGridSpec(
            num_scalar_prefetch=0,
            grid=(b_padded // block_b,),
            in_specs=[
                pl.BlockSpec((block_b, L, H), lambda b: (b, 0, 0)),
                pl.BlockSpec((block_b, L, 1), lambda b: (b, 0, 0)),
                pl.BlockSpec((D, H), lambda b: (0, 0)),
            ],
            out_specs=[
                pl.BlockSpec((block_b, 1), lambda b: (b, 0)),        # per-step block
                pl.BlockSpec((block_b, L, D), lambda b: (b, 0, 0)),
            ],
        ),
        compiler_params=pltpu.CompilerParams(
            dimension_semantics=("parallel",),      # batch axis is independent
            vmem_limit_bytes=vmem_limit),
    )(qd, full_mask, w)

    if b_padded != B:
        score = score[:B]
        simmat = simmat[:B]
    return score, simmat


def colbert_rank_reference(q_hidden, d_hidden, doc_tok, doc_mask, clinear_w):
    col_q = jnp.einsum('blh,dh->bld', q_hidden, clinear_w)
    col_d = jnp.einsum('blh,dh->bld', d_hidden, clinear_w)
    m = skiplist_mask(doc_tok, doc_mask)
    col_d = col_d * m[..., None]
    q_rep = col_q / jnp.maximum(
        jnp.sqrt(jnp.sum(col_q * col_q, -1, keepdims=True)), 1e-12)
    d_rep = col_d / jnp.maximum(
        jnp.sqrt(jnp.sum(col_d * col_d, -1, keepdims=True)), 1e-12)
    sim = jnp.einsum('bqd,bkd->bqk', q_rep, d_rep)
    score = jnp.sum(jnp.max(sim, axis=2), axis=1)[:, None]
    simmat = jnp.concatenate([q_rep, d_rep], axis=1)
    return score, simmat


if __name__ == "__main__":
    # Small shapes consistent with the module (BERT_SIZE -> H, self.dim=128 -> D).
    B, Lq, Ld, H, D = 2, 8, 16, 128, 128

    key = jax.random.PRNGKey(0)
    k1, k2, k3, k4 = jax.random.split(key, 4)

    # Stand-ins for q_reps[-1] / d_reps[-1] (last BERT layer hidden states).
    q_hidden = jax.random.normal(k1, (B, Lq, H), jnp.float32)
    d_hidden = jax.random.normal(k2, (B, Ld, H), jnp.float32)
    # Synthetic doc tokens / attention mask (drives the skiplist mask).
    doc_tok = jax.random.randint(k3, (B, Ld), 0, 2000, dtype=jnp.int32)
    doc_mask = jnp.ones((B, Ld), jnp.float32)
    # clinear: torch.nn.Linear(BERT_SIZE, 128, bias=False) -> weight [D, H].
    clinear_w = 0.02 * jax.random.normal(k4, (D, H), jnp.float32)

    score, simmat = colbert_rank(q_hidden, d_hidden, doc_tok, doc_mask, clinear_w)
    score = jax.block_until_ready(score)
    simmat = jax.block_until_ready(simmat)

    ref_score, ref_simmat = colbert_rank_reference(
        q_hidden, d_hidden, doc_tok, doc_mask, clinear_w)

    assert score.shape == (B, 1) and simmat.shape == (B, Lq + Ld, D)
    assert jnp.allclose(score, ref_score, rtol=2e-2, atol=2e-2)
    assert jnp.allclose(simmat, ref_simmat, rtol=2e-2, atol=2e-2)

    print("KERNEL_OK")
</pallas_src>

<mosaic_0001>
module attributes {stable_mosaic.version = 11 : i64} {
  func.func @_colbert_kernel(%arg0: i32, %arg1: memref<2x24x128xbf16, #tpu.memory_space<vmem>>, %arg2: memref<2x24x1xf32, #tpu.memory_space<vmem>>, %arg3: memref<128x128xbf16, #tpu.memory_space<vmem>>, %arg4: memref<2x1xf32, #tpu.memory_space<vmem>>, %arg5: memref<2x24x128xf32, #tpu.memory_space<vmem>>) attributes {dimension_semantics = [#tpu.dimension_semantics<parallel>], iteration_bounds = array<i64: 1>, scalar_prefetch = 0 : i64, scratch_operands = 0 : i64, tpu.core_type = #tpu.core_type<tc>, window_params = [{transform_indices = @transform_0, window_bounds = array<i64: 2, 24, 128>}, {transform_indices = @transform_1, window_bounds = array<i64: 2, 24, 1>}, {pipeline_mode = #tpu.pipeline_mode<synchronous>, transform_indices = @transform_2, window_bounds = array<i64: 128, 128>}, {transform_indices = @transform_3, window_bounds = array<i64: 2, 1>}, {transform_indices = @transform_4, window_bounds = array<i64: 2, 24, 128>}]} {
    %c0 = arith.constant 0 : index
    %c0_0 = arith.constant 0 : index
    %c0_1 = arith.constant 0 : index
    %0 = vector.load %arg1[%c0, %c0_0, %c0_1] : memref<2x24x128xbf16, #tpu.memory_space<vmem>>, vector<2x24x128xbf16>
    %c0_2 = arith.constant 0 : index
    %c0_3 = arith.constant 0 : index
    %1 = vector.load %arg3[%c0_2, %c0_3] : memref<128x128xbf16, #tpu.memory_space<vmem>>, vector<128x128xbf16>
    %c0_4 = arith.constant 0 : index
    %c0_5 = arith.constant 0 : index
    %c0_6 = arith.constant 0 : index
    %2 = vector.load %arg2[%c0_4, %c0_5, %c0_6] : memref<2x24x1xf32, #tpu.memory_space<vmem>>, vector<2x24x1xf32>
    %3 = vector.shape_cast %0 : vector<2x24x128xbf16> to vector<48x128xbf16>
    %cst = arith.constant dense<0.000000e+00> : vector<48x128xf32>
    %4 = tpu.matmul %3, %1, %cst {dimension_numbers = #tpu.dot_dimension_numbers<[1], [1], [0], [0], [0, 0, 1, 0], [], []>} : vector<48x128xbf16>, vector<128x128xbf16>, vector<48x128xf32> -> vector<48x128xf32>
    %5 = vector.shape_cast %4 : vector<48x128xf32> to vector<2x24x128xf32>
    %6 = vector.broadcast %2 : vector<2x24x1xf32> to vector<2x24x128xf32>
    %7 = arith.mulf %5, %6 : vector<2x24x128xf32>
    %8 = arith.mulf %7, %7 : vector<2x24x128xf32>
    %cst_7 = arith.constant dense<0.000000e+00> : vector<2x24xf32>
    %9 = vector.multi_reduction <add>, %8, %cst_7 [2] : vector<2x24x128xf32> to vector<2x24xf32>
    %10 = vector.shape_cast %9 : vector<2x24xf32> to vector<2x24x1xf32>
    %cst_8 = arith.constant 1.000000e-24 : f32
    %11 = vector.broadcast %cst_8 : f32 to vector<2x24x1xf32>
    %12 = arith.maximumf %10, %11 : vector<2x24x1xf32>
    %13 = math.rsqrt %12 : vector<2x24x1xf32>
    %14 = vector.broadcast %13 : vector<2x24x1xf32> to vector<2x24x128xf32>
    %15 = arith.mulf %7, %14 : vector<2x24x128xf32>
    %c0_9 = arith.constant 0 : index
    %c0_10 = arith.constant 0 : index
    %c0_11 = arith.constant 0 : index
    %16 = vector.load %arg5[%c0_9, %c0_10, %c0_11] : memref<2x24x128xf32, #tpu.memory_space<vmem>>, vector<2x24x128xf32>
    tpu.vector_store %arg5[%c0_9, %c0_10, %c0_11], %15 {strides = array<i32>} : memref<2x24x128xf32, #tpu.memory_space<vmem>>, vector<2x24x128xf32>,
    %17 = vector.extract_strided_slice %15 {offsets = [0, 0, 0], sizes = [2, 8, 128], strides = [1, 1, 1]} : vector<2x24x128xf32> to vector<2x8x128xf32>
    %18 = vector.extract_strided_slice %15 {offsets = [0, 8, 0], sizes = [2, 16, 128], strides = [1, 1, 1]} : vector<2x24x128xf32> to vector<2x16x128xf32>
    %cst_12 = arith.constant dense<0.000000e+00> : vector<2x8x16xf32>
    %19 = tpu.matmul %17, %18, %cst_12 {dimension_numbers = #tpu.dot_dimension_numbers<[2], [2], [1], [1], [0, 0, 0, 1, 1, 1], [0], [0]>} : vector<2x8x128xf32>, vector<2x16x128xf32>, vector<2x8x16xf32> -> vector<2x8x16xf32>
    %cst_13 = arith.constant dense<0xFF800000> : vector<2x8xf32>
    %20 = vector.multi_reduction <maximumf>, %19, %cst_13 [2] : vector<2x8x16xf32> to vector<2x8xf32>
    %cst_14 = arith.constant dense<0.000000e+00> : vector<2xf32>
    %21 = vector.multi_reduction <add>, %20, %cst_14 [1] : vector<2x8xf32> to vector<2xf32>
    %22 = vector.shape_cast %21 : vector<2xf32> to vector<2x1xf32>
    %c0_15 = arith.constant 0 : index
    %c0_16 = arith.constant 0 : index
    %23 = vector.load %arg4[%c0_15, %c0_16] : memref<2x1xf32, #tpu.memory_space<vmem>>, vector<2x1xf32>
    tpu.vector_store %arg4[%c0_15, %c0_16], %22 {strides = array<i32>} : memref<2x1xf32, #tpu.memory_space<vmem>>, vector<2x1xf32>,
    return
  }
  func.func @transform_0(%arg0: i32) -> (i32, i32, i32) {
    %c0_i32 = arith.constant 0 : i32
    %c0_i32_0 = arith.constant 0 : i32
    %c0_i32_1 = arith.constant 0 : i32
    return %arg0, %c0_i32, %c0_i32_0 : i32, i32, i32
  }
  func.func @transform_1(%arg0: i32) -> (i32, i32, i32) {
    %c0_i32 = arith.constant 0 : i32
    %c0_i32_0 = arith.constant 0 : i32
    %c0_i32_1 = arith.constant 0 : i32
    return %arg0, %c0_i32, %c0_i32_0 : i32, i32, i32
  }
  func.func @transform_2(%arg0: i32) -> (i32, i32) {
    %c0_i32 = arith.constant 0 : i32
    %c0_i32_0 = arith.constant 0 : i32
    %c0_i32_1 = arith.constant 0 : i32
    return %c0_i32, %c0_i32_0 : i32, i32
  }
  func.func @transform_3(%arg0: i32) -> (i32, i32) {
    %c0_i32 = arith.constant 0 : i32
    %c0_i32_0 = arith.constant 0 : i32
    return %arg0, %c0_i32 : i32, i32
  }
  func.func @transform_4(%arg0: i32) -> (i32, i32, i32) {
    %c0_i32 = arith.constant 0 : i32
    %c0_i32_0 = arith.constant 0 : i32
    %c0_i32_1 = arith.constant 0 : i32
    return %arg0, %c0_i32, %c0_i32_0 : i32, i32, i32
  }
}

</mosaic_0001>

<llo_original>
// kernel: tpu_custom_call.1
$region0: #{tpu_custom_call.1}
  #allocation0 [shape = 'u32[]', space=smem, size = 0x4, offset = 0x4, fixed_abs, tag = 'smem constant byte address 0x4 - core index']
  #allocation1 [shape = 'u32[144,128]{1,0:T(1,128)}', space=vmem, size = 0x12000, scoped, tag = 'internal scratch']
  %s0 = inlined_call_operand.vmem [shape: bf16[2,24,128], index: 0, kind: input, shape index: {}]
  %s1 = inlined_call_operand.vmem [shape: f32[2,24,1], index: 1, kind: input, shape index: {}]
  %s2 = inlined_call_operand.hbm [shape: bf16[128,128], index: 2, kind: input, shape index: {}]
  %s3 = inlined_call_operand.vmem [shape: f32[2,1], index: 3, kind: output, shape index: {0}]
  %s4 = inlined_call_operand.hbm [shape: f32[2,24,128], index: 4, kind: output, shape index: {1}]
  %5 = xla_tuple %s3, %s4
  %s6 = sld [smem:[#allocation0]]
  $region34: #{tpu_custom_call.1} parent=0
    _
  %s8 = ssub.s32 1, %s6
  %s9 = scalar_select 0, %s8, %s6
  $region1: #{tpu_custom_call.1} parent=0
    #allocation2 [shape = 'u8[32768]{0}', space=vmem, size = 0x8000, scoped, tag = 'input window, operand 2, single buffered']
    #allocation3 [shape = 's32[1]{0}', space=sflag, size = 0x4, scoped, tag = 'scoped memory for tpu_custom_call.1']
    #allocation4 [shape = 's32[1]{0}', space=sflag, size = 0x4, scoped, tag = 'scoped memory for tpu_custom_call.1']
    #allocation5 [shape = 'u8[24576]{0}', space=vmem, size = 0x6000, scoped, tag = 'output window, operand 1, single buffered']
    %10 = vsyncpa [#allocation3], 0
    %11 = vsyncpa [#allocation4], 0
    // Predicated region
    $region2: #{tpu_custom_call.1} parent=1 // pred_check
      _
    $region3: #{tpu_custom_call.1} parent=1 // pred_check_branch
      %13 = sbr.rel (0) target = $region5
    $region4: #{tpu_custom_call.1} parent=1 // pred_region
      _
    $region5: #{tpu_custom_call.1} parent=1 // pred_fallthru
      _
    // Predicated region
    $region6: #{tpu_custom_call.1} parent=1 // pred_check
      _
    $region7: #{tpu_custom_call.1} parent=1 // pred_check_branch
      %15 = sbr.rel (0) target = $region9
    $region8: #{tpu_custom_call.1} parent=1 // pred_region
      _
    $region9: #{tpu_custom_call.1} parent=1 // pred_fallthru
      _
    // Predicated region
    $region10: #{tpu_custom_call.1} parent=1 // pred_check
      _
    $region11: #{tpu_custom_call.1} parent=1 // pred_check_branch
      %17 = sbr.rel (0) target = $region13
    $region12: #{tpu_custom_call.1} parent=1 // pred_region
      %s19 = ssub.s32 1024, 1024
      %20 = vsyncadd [#allocation3], %s19
      %s21 = sshll.u32 [#allocation2], 4
      %s22 = int_to_ptr.vmem [resolvable:$true] %s21
      %27 = dma.hbm_to_vmem [thread:$0]  %s2, 1024, %s22, [#allocation3], 64, 64, 4
    $region13: #{tpu_custom_call.1} parent=1 // pred_fallthru
      _
    // Predicated region
    $region14: #{tpu_custom_call.1} parent=1 // pred_check
      _
    $region15: #{tpu_custom_call.1} parent=1 // pred_check_branch
      %29 = sbr.rel (0) target = $region17
    $region16: #{tpu_custom_call.1} parent=1 // pred_region
      %30 = dma.done [#allocation3], 1024
    $region17: #{tpu_custom_call.1} parent=1 // pred_fallthru
      _
    %v32 = vld [vmem:[%s0] sm:$0xf]
    %v33 = vld [vmem:[%s0 + $0x4] sm:$0xf]
    %v34 = vld [vmem:[%s0 + $0x8] sm:$0xf]
    %v35 = vld [vmem:[%s0 + $0xc] sm:$0xf]
    %v36 = vld [vmem:[%s0 + $0x10] sm:$0xf]
    %v37 = vld [vmem:[%s0 + $0x14] sm:$0xf]
    %v38 = vld [vmem:[#allocation2] sm:$0xf]
    %v39 = vld [vmem:[#allocation2 + $0x4] sm:$0xf]
    %v40 = vld [vmem:[#allocation2 + $0x8] sm:$0xf]
    %v41 = vld [vmem:[#allocation2 + $0xc] sm:$0xf]
    %v42 = vld [vmem:[#allocation2 + $0x10] sm:$0xf]
    %v43 = vld [vmem:[#allocation2 + $0x14] sm:$0xf]
    %v44 = vld [vmem:[#allocation2 + $0x18] sm:$0xf]
    %v45 = vld [vmem:[#allocation2 + $0x1c] sm:$0xf]
    %v46 = vld [vmem:[#allocation2 + $0x20] sm:$0xf]
    %v47 = vld [vmem:[#allocation2 + $0x24] sm:$0xf]
    %v48 = vld [vmem:[#allocation2 + $0x28] sm:$0xf]
    %v49 = vld [vmem:[#allocation2 + $0x2c] sm:$0xf]
    %v50 = vld [vmem:[#allocation2 + $0x30] sm:$0xf]
    %v51 = vld [vmem:[#allocation2 + $0x34] sm:$0xf]
    %v52 = vld [vmem:[#allocation2 + $0x38] sm:$0xf]
    %v53 = vld [vmem:[#allocation2 + $0x3c] sm:$0xf]
    %v54 = vld [vmem:[%s1] sm:$0xff]
    %v55 = vld [vmem:[%s1 + $0x8] sm:$0xff]
    %v56 = vld [vmem:[%s1 + $0x10] sm:$0xff]
    %v57 = vld [vmem:[%s1 + $0x18] sm:$0xff]
    %v58 = vld [vmem:[%s1 + $0x20] sm:$0xff]
    %v59 = vld [vmem:[%s1 + $0x28] sm:$0xff]
    %v66 = vunpack.c.l.b16 %v32
    %v67 = vunpack.c.l.b16 %v33
    %v68 = vunpack.c.l.b16 %v34
    %v69 = vunpack.c.l.b16 %v35
    %v70 = vunpack.c.l.b16 %v36
    %v71 = vunpack.c.l.b16 %v37
    %v72 = vpack.c.b16 %v67, %v66
    %v73 = vpack.c.b16 %v69, %v68
    %v74 = vpack.c.b16 %v71, %v70
    %v94 = vunpack.c.l.b16 %v38
    %v95 = vunpack.c.l.b16 %v39
    %v96 = vunpack.c.l.b16 %v40
    %v97 = vunpack.c.l.b16 %v41
    %v98 = vunpack.c.l.b16 %v42
    %v99 = vunpack.c.l.b16 %v43
    %v100 = vunpack.c.l.b16 %v44
    %v101 = vunpack.c.l.b16 %v45
    %v102 = vunpack.c.l.b16 %v46
    %v103 = vunpack.c.l.b16 %v47
    %v104 = vunpack.c.l.b16 %v48
    %v105 = vunpack.c.l.b16 %v49
    %v106 = vunpack.c.l.b16 %v50
    %v107 = vunpack.c.l.b16 %v51
    %v108 = vunpack.c.l.b16 %v52
    %v109 = vunpack.c.l.b16 %v53
    %v110 = vpack.c.b16 %v95, %v94
    %v111 = vpack.c.b16 %v97, %v96
    %v112 = vpack.c.b16 %v99, %v98
    %v113 = vpack.c.b16 %v101, %v100
    %v114 = vpack.c.b16 %v103, %v102
    %v115 = vpack.c.b16 %v105, %v104
    %v116 = vpack.c.b16 %v107, %v106
    %v117 = vpack.c.b16 %v109, %v108
    %126 = vmatprep.subr.bf16.mxu0 0
    %127 = vmatpush1.bf16.xpose.msra.mxu0 %v110
    %128 = vmatprep.subr.bf16.mxu0 0
    %129 = vmatpush1.bf16.xpose.msra.mxu0 %v111
    %130 = vmatprep.subr.bf16.mxu0 0
    %131 = vmatpush1.bf16.xpose.msra.mxu0 %v112
    %132 = vmatprep.subr.bf16.mxu0 0
    %133 = vmatpush1.bf16.xpose.msra.mxu0 %v113
    %134 = vmatprep.subr.bf16.mxu0 0
    %135 = vmatpush1.bf16.xpose.msra.mxu0 %v114
    %136 = vmatprep.subr.bf16.mxu0 0
    %137 = vmatpush1.bf16.xpose.msra.mxu0 %v115
    %138 = vmatprep.subr.bf16.mxu0 0
    %139 = vmatpush1.bf16.xpose.msra.mxu0 %v116
    %140 = vmatprep.subr.bf16.mxu0 0
    %141 = vmatpush1.bf16.xpose.msra.mxu0 %v117
    %142 = vmatprep.subr.bf16.mxu0 0
    %143 = vmatpush1.bf16.xpose.msra.mxu0 0
    %144 = vmatprep.subr.bf16.mxu0 0
    %145 = vmatpush1.bf16.xpose.msra.mxu0 0
    %146 = vmatprep.subr.bf16.mxu0 0
    %147 = vmatpush1.bf16.xpose.msra.mxu0 0
    %148 = vmatprep.subr.bf16.mxu0 0
    %149 = vmatpush1.bf16.xpose.msra.mxu0 0
    %150 = vmatprep.subr.bf16.mxu0 0
    %151 = vmatpush1.bf16.xpose.msra.mxu0 0
    %152 = vmatprep.subr.bf16.mxu0 0
    %153 = vmatpush1.bf16.xpose.msra.mxu0 0
    %154 = vmatprep.subr.bf16.mxu0 0
    %155 = vmatpush1.bf16.xpose.msra.mxu0 0
    %156 = vmatprep.subr.bf16.mxu0 0
    %157 = vmatpush1.bf16.xpose.msra.mxu0 0
    %158 = vmatprep.mubr.bf16.mxu0 0
    %159 = vmatmul.mubr.bf16.gmra.mrb[0].mxu0 %v72
    %v160 = vpop.f32.mrb[0].mxu0
    %v161 = vadd.f32 0.0, %v160
    %v162 = vpop.f32.mrb[0].mxu0
    %v163 = vpop.f32.mrb[0].mxu0
    %v164 = vadd.f32 0.0, %v163
    %v165 = vpop.f32.mrb[0].mxu0
    %166 = vmatprep.mubr.bf16.mxu0 0
    %167 = vmatmul.mubr.bf16.gmra.mrb[0].mxu0 %v73
    %v168 = vpop.f32.mrb[0].mxu0
    %v169 = vadd.f32 0.0, %v168
    %v170 = vpop.f32.mrb[0].mxu0
    %v171 = vpop.f32.mrb[0].mxu0
    %v172 = vadd.f32 0.0, %v171
    %v173 = vpop.f32.mrb[0].mxu0
    %174 = vmatprep.mubr.bf16.mxu0 0
    %175 = vmatmul.mubr.bf16.gmra.mrb[0].mxu0 %v74
    %v176 = vpop.f32.mrb[0].mxu0
    %v177 = vadd.f32 0.0, %v176
    %v178 = vpop.f32.mrb[0].mxu0
    %v179 = vpop.f32.mrb[0].mxu0
    %v180 = vadd.f32 0.0, %v179
    %v181 = vpop.f32.mrb[0].mxu0
    %182 = vdwg.mxu0
    %184 = vset.pattern.permute.xlu0 0
    %185 = vperm.xlu0 %184, %v54
    %v186 = vpop.permute.xlu0 %185
    %189 = vset.pattern.permute.xlu0 0
    %190 = vperm.xlu0 %189, %v55
    %v191 = vpop.permute.xlu0 %190
    %194 = vset.pattern.permute.xlu0 0
    %195 = vperm.xlu0 %194, %v56
    %v196 = vpop.permute.xlu0 %195
    %199 = vset.pattern.permute.xlu0 0
    %200 = vperm.xlu0 %199, %v57
    %v201 = vpop.permute.xlu0 %200
    %204 = vset.pattern.permute.xlu0 0
    %205 = vperm.xlu0 %204, %v58
    %v206 = vpop.permute.xlu0 %205
    %209 = vset.pattern.permute.xlu0 0
    %210 = vperm.xlu0 %209, %v59
    %v211 = vpop.permute.xlu0 %210
    %v213 = vmul.f32 %v161, %v186
    %v214 = vmul.f32 %v164, %v191
    %v215 = vmul.f32 %v169, %v196
    %v216 = vmul.f32 %v172, %v201
    %v217 = vmul.f32 %v177, %v206
    %v218 = vmul.f32 %v180, %v211
    %v219 = vmul.f32 %v213, %v213
    %v220 = vmul.f32 %v214, %v214
    %v221 = vmul.f32 %v215, %v215
    %v222 = vmul.f32 %v216, %v216
    %v223 = vmul.f32 %v217, %v217
    %v224 = vmul.f32 %v218, %v218
    %225 = vadd.xlane.f32.xlu0 %v219
    %v226 = vpop.xlane.xlu0 %225
    %227 = vadd.xlane.f32.xlu0 %v220
    %v228 = vpop.xlane.xlu0 %227
    %229 = vadd.xlane.f32.xlu0 %v221
    %v230 = vpop.xlane.xlu0 %229
    %231 = vadd.xlane.f32.xlu0 %v222
    %v232 = vpop.xlane.xlu0 %231
    %233 = vadd.xlane.f32.xlu0 %v223
    %v234 = vpop.xlane.xlu0 %233
    %235 = vadd.xlane.f32.xlu0 %v224
    %v236 = vpop.xlane.xlu0 %235
    %v237 = vmax.f32 %v226, 1e-24
    %v238 = vmax.f32 %v228, 1e-24
    %v239 = vmax.f32 %v230, 1e-24
    %v240 = vmax.f32 %v232, 1e-24
    %v241 = vmax.f32 %v234, 1e-24
    %v242 = vmax.f32 %v236, 1e-24
    %v243 = vrsqrt.pop %v237
    %v244 = vrsqrt.pop %v238
    %v245 = vrsqrt.pop %v239
    %v246 = vrsqrt.pop %v240
    %v247 = vrsqrt.pop %v241
    %v248 = vrsqrt.pop %v242
    %v249 = vmul.f32 %v213, %v243
    %v250 = vmul.f32 %v214, %v244
    %v251 = vmul.f32 %v215, %v245
    %v252 = vmul.f32 %v216, %v246
    %v253 = vmul.f32 %v217, %v247
    %v254 = vmul.f32 %v218, %v248
    %255 = vst [vmem:[#allocation5] sm:$0xff] %v249
    %256 = vst [vmem:[#allocation5 + $0x8] sm:$0xff] %v250
    %257 = vst [vmem:[#allocation5 + $0x10] sm:$0xff] %v251
    %258 = vst [vmem:[#allocation5 + $0x18] sm:$0xff] %v252
    %259 = vst [vmem:[#allocation5 + $0x20] sm:$0xff] %v253
    %260 = vst [vmem:[#allocation5 + $0x28] sm:$0xff] %v254
    %261 = vmatprep.subr.mxu0 0.0
    %262 = vmatpush1.xpose.msra.mxu0 %v250
    %263 = vmatprep.subr.mxu0 0.0
    %264 = vmatpush1.xpose.msra.mxu0 %v251
    %265 = vmatprep.subr.mxu0 0.0
    %266 = vmatpush1.xpose.msra.mxu0 0.0
    %267 = vmatprep.subr.mxu0 0.0
    %268 = vmatpush1.xpose.msra.mxu0 0.0
    %269 = vmatprep.subr.mxu0 0.0
    %270 = vmatpush1.xpose.msra.mxu0 0.0
    %271 = vmatprep.subr.mxu0 0.0
    %272 = vmatpush1.xpose.msra.mxu0 0.0
    %273 = vmatprep.subr.mxu0 0.0
    %274 = vmatpush1.xpose.msra.mxu0 0.0
    %275 = vmatprep.subr.mxu0 0.0
    %276 = vmatpush1.xpose.msra.mxu0 0.0
    %277 = vmatprep.subr.mxu0 0.0
    %278 = vmatpush1.xpose.msra.mxu0 0.0
    %279 = vmatprep.subr.mxu0 0.0
    %280 = vmatpush1.xpose.msra.mxu0 0.0
    %281 = vmatprep.subr.mxu0 0.0
    %282 = vmatpush1.xpose.msra.mxu0 0.0
    %283 = vmatprep.subr.mxu0 0.0
    %284 = vmatpush1.xpose.msra.mxu0 0.0
    %285 = vmatprep.subr.mxu0 0.0
    %286 = vmatpush1.xpose.msra.mxu0 0.0
    %287 = vmatprep.subr.mxu0 0.0
    %288 = vmatpush1.xpose.msra.mxu0 0.0
    %289 = vmatprep.subr.mxu0 0.0
    %290 = vmatpush1.xpose.msra.mxu0 0.0
    %291 = vmatprep.subr.mxu0 0.0
    %292 = vmatpush1.xpose.msra.mxu0 0.0
    %293 = vmatprep.subr.mxu0 0.0
    %294 = vmatpush1.xpose.msra.mxu0 0.0
    %295 = vmatprep.subr.mxu0 0.0
    %296 = vmatpush1.xpose.msra.mxu0 0.0
    %297 = vmatprep.subr.mxu0 0.0
    %298 = vmatpush1.xpose.msra.mxu0 0.0
    %299 = vmatprep.subr.mxu0 0.0
    %300 = vmatpush1.xpose.msra.mxu0 0.0
    %301 = vmatprep.subr.mxu0 0.0
    %302 = vmatpush1.xpose.msra.mxu0 0.0
    %303 = vmatprep.subr.mxu0 0.0
    %304 = vmatpush1.xpose.msra.mxu0 0.0
    %305 = vmatprep.subr.mxu0 0.0
    %306 = vmatpush1.xpose.msra.mxu0 0.0
    %307 = vmatprep.subr.mxu0 0.0
    %308 = vmatpush1.xpose.msra.mxu0 0.0
    %309 = vmatprep.subr.mxu0 0.0
    %310 = vmatpush1.xpose.msra.mxu0 0.0
    %311 = vmatprep.subr.mxu0 0.0
    %312 = vmatpush1.xpose.msra.mxu0 0.0
    %313 = vmatprep.subr.mxu0 0.0
    %314 = vmatpush1.xpose.msra.mxu0 0.0
    %315 = vmatprep.subr.mxu0 0.0
    %316 = vmatpush1.xpose.msra.mxu0 0.0
    %317 = vmatprep.subr.mxu0 0.0
    %318 = vmatpush1.xpose.msra.mxu0 0.0
    %319 = vmatprep.subr.mxu0 0.0
    %320 = vmatpush1.xpose.msra.mxu0 0.0
    %321 = vmatprep.subr.mxu0 0.0
    %322 = vmatpush1.xpose.msra.mxu0 0.0
    %323 = vmatprep.subr.mxu0 0.0
    %324 = vmatpush1.xpose.msra.mxu0 0.0
    %325 = vmatprep.mubr.f32.mxu0 0.0
    %326 = vmatmul.mubr.f32.gmra.mrb[0].mxu0 %v249
    %v327 = vpop.f32.mrb[0].mxu0
    %v328 = vadd.f32 0.0, %v327
    %v329 = vpop.f32.mrb[0].mxu0
    %330 = vdwg.mxu0
    %331 = vmatprep.subr.mxu0 0.0
    %332 = vmatpush1.xpose.msra.mxu0 %v253
    %333 = vmatprep.subr.mxu0 0.0
    %334 = vmatpush1.xpose.msra.mxu0 %v254
    %335 = vmatprep.subr.mxu0 0.0
    %336 = vmatpush1.xpose.msra.mxu0 0.0
    %337 = vmatprep.subr.mxu0 0.0
    %338 = vmatpush1.xpose.msra.mxu0 0.0
    %339 = vmatprep.subr.mxu0 0.0
    %340 = vmatpush1.xpose.msra.mxu0 0.0
    %341 = vmatprep.subr.mxu0 0.0
    %342 = vmatpush1.xpose.msra.mxu0 0.0
    %343 = vmatprep.subr.mxu0 0.0
    %344 = vmatpush1.xpose.msra.mxu0 0.0
    %345 = vmatprep.subr.mxu0 0.0
    %346 = vmatpush1.xpose.msra.mxu0 0.0
    %347 = vmatprep.subr.mxu0 0.0
    %348 = vmatpush1.xpose.msra.mxu0 0.0
    %349 = vmatprep.subr.mxu0 0.0
    %350 = vmatpush1.xpose.msra.mxu0 0.0
    %351 = vmatprep.subr.mxu0 0.0
    %352 = vmatpush1.xpose.msra.mxu0 0.0
    %353 = vmatprep.subr.mxu0 0.0
    %354 = vmatpush1.xpose.msra.mxu0 0.0
    %355 = vmatprep.subr.mxu0 0.0
    %356 = vmatpush1.xpose.msra.mxu0 0.0
    %357 = vmatprep.subr.mxu0 0.0
    %358 = vmatpush1.xpose.msra.mxu0 0.0
    %359 = vmatprep.subr.mxu0 0.0
    %360 = vmatpush1.xpose.msra.mxu0 0.0
    %361 = vmatprep.subr.mxu0 0.0
    %362 = vmatpush1.xpose.msra.mxu0 0.0
    %363 = vmatprep.subr.mxu0 0.0
    %364 = vmatpush1.xpose.msra.mxu0 0.0
    %365 = vmatprep.subr.mxu0 0.0
    %366 = vmatpush1.xpose.msra.mxu0 0.0
    %367 = vmatprep.subr.mxu0 0.0
    %368 = vmatpush1.xpose.msra.mxu0 0.0
    %369 = vmatprep.subr.mxu0 0.0
    %370 = vmatpush1.xpose.msra.mxu0 0.0
    %371 = vmatprep.subr.mxu0 0.0
    %372 = vmatpush1.xpose.msra.mxu0 0.0
    %373 = vmatprep.subr.mxu0 0.0
    %374 = vmatpush1.xpose.msra.mxu0 0.0
    %375 = vmatprep.subr.mxu0 0.0
    %376 = vmatpush1.xpose.msra.mxu0 0.0
    %377 = vmatprep.subr.mxu0 0.0
    %378 = vmatpush1.xpose.msra.mxu0 0.0
    %379 = vmatprep.subr.mxu0 0.0
    %380 = vmatpush1.xpose.msra.mxu0 0.0
    %381 = vmatprep.subr.mxu0 0.0
    %382 = vmatpush1.xpose.msra.mxu0 0.0
    %383 = vmatprep.subr.mxu0 0.0
    %384 = vmatpush1.xpose.msra.mxu0 0.0
    %385 = vmatprep.subr.mxu0 0.0
    %386 = vmatpush1.xpose.msra.mxu0 0.0
    %387 = vmatprep.subr.mxu0 0.0
    %388 = vmatpush1.xpose.msra.mxu0 0.0
    %389 = vmatprep.subr.mxu0 0.0
    %390 = vmatpush1.xpose.msra.mxu0 0.0
    %391 = vmatprep.subr.mxu0 0.0
    %392 = vmatpush1.xpose.msra.mxu0 0.0
    %393 = vmatprep.subr.mxu0 0.0
    %394 = vmatpush1.xpose.msra.mxu0 0.0
    %395 = vmatprep.mubr.f32.mxu0 0.0
    %396 = vmatmul.mubr.f32.gmra.mrb[0].mxu0 %v252
    %v397 = vpop.f32.mrb[0].mxu0
    %v398 = vadd.f32 0.0, %v397
    %v399 = vpop.f32.mrb[0].mxu0
    %400 = vdwg.mxu0
    %vm401 = vcmask 130048
    %v402 = vsel %vm401, %v328, -inf
    %403 = vmax.xlane.f32.xlu0 %v402
    %v404 = vpop.xlane.xlu0 %403
    %v405 = vsel %vm401, %v398, -inf
    %406 = vmax.xlane.f32.xlu0 %v405
    %v407 = vpop.xlane.xlu0 %406
    %v410 = vlaneseq
    %v411 = vand.u32 %v410, 127
    %v412 = vlaneseq
    %v413 = vshrl.u32 %v412, 7
    %v414 = vsub.s32 %v411, %v413
    %v415 = vrot.slane %v404, %v414
    %v416 = vlaneseq
    %v417 = vshrl.u32 %v416, 7
    %v418 = vsub.s32 %v411, %v417
    %v419 = vrot.slane %v407, %v418
    %vm420 = vcmask 1041409
    %v421 = vsel %vm420, %v419, %v415
    %vm423 = vcmask 58368
    %v424 = vsel %vm423, %v421, 0.0
    %425 = vadd.xlane.f32.xlu0 %v424
    %v426 = vpop.xlane.xlu0 %425
    %vm427 = vcmask 1024
    %428 = vst.msk [vmem:[%s3] sm:$0x3] %vm427, %v426
    // Predicated region
    $region18: #{tpu_custom_call.1} parent=1 // pred_check
      _
    $region19: #{tpu_custom_call.1} parent=1 // pred_check_branch
      %430 = sbr.rel (0) target = $region21
    $region20: #{tpu_custom_call.1} parent=1 // pred_region
      _
    $region21: #{tpu_custom_call.1} parent=1 // pred_fallthru
      _
    // Predicated region
    $region22: #{tpu_custom_call.1} parent=1 // pred_check
      _
    $region23: #{tpu_custom_call.1} parent=1 // pred_check_branch
      %432 = sbr.rel (0) target = $region25
    $region24: #{tpu_custom_call.1} parent=1 // pred_region
      %s434 = ssub.s32 768, 768
      %435 = vsyncadd [#allocation4], %s434
      %s436 = sshll.u32 [#allocation5], 4
      %s437 = int_to_ptr.vmem [resolvable:$true] %s436
      %442 = dma.vmem_to_hbm [thread:$0]  %s437, 768, %s4, [#allocation4], 128, 128, 8
    $region25: #{tpu_custom_call.1} parent=1 // pred_fallthru
      _
    // Predicated region
    $region26: #{tpu_custom_call.1} parent=1 // pred_check
      _
    $region27: #{tpu_custom_call.1} parent=1 // pred_check_branch
      %444 = sbr.rel (0) target = $region29
    $region28: #{tpu_custom_call.1} parent=1 // pred_region
      _
    $region29: #{tpu_custom_call.1} parent=1 // pred_fallthru
      _
    // Predicated region
    $region30: #{tpu_custom_call.1} parent=1 // pred_check
      _
    $region31: #{tpu_custom_call.1} parent=1 // pred_check_branch
      %446 = sbr.rel (0) target = $region33
    $region32: #{tpu_custom_call.1} parent=1 // pred_region
      %447 = dma.done [#allocation4], 768
    $region33: #{tpu_custom_call.1} parent=1 // pred_fallthru
      _
    %448 = vsyncpa [#allocation3], 1
    %449 = vsyncpa [#allocation4], 1

</llo_original>
